<compile_context>
chip_gen: v6e
topology: v6e:2x2x1
jax: 0.10.0
libtpu: 0.0.40
codegen_flags: <defaults>
</compile_context>

<pallas_src>
import functools
import random as pyrandom

import jax
import jax.numpy as jnp
from jax.experimental import pallas as pl
from jax.experimental.pallas import tpu as pltpu

LANE = 128      # lane width (last dim)
SUBLANE = 8     # f32 sublane width (second-to-last dim)


def _round_up(n, m):
    return ((n + m - 1) // m) * m


def _mxu_prefers_bf16():
    """bf16 matmul inputs on v6e/v7x (bf16-native MXU); f32 on v5e and older."""
    try:
        kind = jax.devices()[0].device_kind.lower()
    except Exception:
        return False
    return not any(v in kind for v in ("v2", "v3", "v4", "v5"))


# ---------------------------------------------------------------------------
# Activations (static at trace time -> straight-line VPU/EUP code)
# ---------------------------------------------------------------------------
def _apply_act(y, act):
    if act == "relu":
        return jnp.maximum(y, 0.0)
    if act == "tanh":
        return jnp.tanh(y)
    if act == "sigmoid":
        return jax.nn.sigmoid(y)
    if act == "elu":
        # ELU, alpha=1.0 (PyTorch default).
        # TODO(synk): jnp.expm1 would match PyTorch slightly better near y=0,
        # but its Mosaic lowering is not guaranteed on all versions; exp(y)-1
        # differs by <~1.2e-7 in f32, far below the test tolerances.
        return jnp.where(y > 0.0, y, jnp.exp(y) - 1.0)
    if act == "none":
        return y
    raise ValueError(f"unknown activation {act!r}")


# ---------------------------------------------------------------------------
# Fused MLP kernel: the whole network in one kernel body.
#   refs = (x_ref, w0, b0, w1, b1, ..., wL, bL, o_ref)
# Weight dtype drives matmul input dtype; accumulation is always f32, and the
# bias + activation epilogue runs in f32.
# ---------------------------------------------------------------------------
def fused_mlp_kernel(*refs, acts):
    x_ref = refs[0]
    o_ref = refs[-1]
    param_refs = refs[1:-1]

    h = x_ref[...].astype(jnp.float32)               # (TB, Din) f32
    for i, act in enumerate(acts):                   # unrolls at trace time
        w = param_refs[2 * i][...]                   # (Din_i, Dout_i_p)
        b = param_refs[2 * i + 1][...]               # (1, Dout_i_p) f32
        y = jnp.dot(h.astype(w.dtype), w,
                    preferred_element_type=jnp.float32)   # MXU, f32 acc
        h = _apply_act(y + b, act)                   # f32 VPU / EUP
    o_ref[...] = h.astype(o_ref.dtype)


# ---------------------------------------------------------------------------
# Parameter construction (mirrors torch nn.Linear default init).
# ---------------------------------------------------------------------------
def init_linear(key, in_features, out_features):
    # PyTorch nn.Linear: weight, bias ~ U(-1/sqrt(fan_in), 1/sqrt(fan_in))
    kw, kb = jax.random.split(key)
    bound = 1.0 / float(in_features) ** 0.5
    w = jax.random.uniform(kw, (in_features, out_features), jnp.float32,
                           -bound, bound)
    b = jax.random.uniform(kb, (1, out_features), jnp.float32, -bound, bound)
    return w, b


def build_nn_params(key, input_size, hidden_sizes, output_size, *, act_seed=0):
    """Unpadded layers [(w, b, act), ...] matching the torch module structure.

    # TODO(synk): activation draw uses a host-side Python RNG, so it will not
    # bit-match the torch.randint sequence -- same distribution only.
    """
    acts_pool = ("relu", "tanh", "sigmoid", "elu")
    rng = pyrandom.Random(act_seed)
    layers = []
    prev = input_size
    for size in hidden_sizes:
        key, k_lin = jax.random.split(key)
        w, b = init_linear(k_lin, prev, size)
        layers.append((w, b, acts_pool[rng.randrange(len(acts_pool))]))
        prev = size
    key, k_lin = jax.random.split(key)
    w, b = init_linear(k_lin, prev, output_size)
    layers.append((w, b, "none"))   # final Linear has no activation
    return layers


def pad_layers(layers, *, use_bf16=False):
    """Zero-pad feature dims up to 128 lanes (done once at init).

    The FIRST layer keeps its true input dim so x never needs a padded copy.
    Invariant (required for correctness): for every layer i >= 1 the weight
    rows matching the padded output columns of layer i-1 are zero, so values
    leaked into padded columns by the activation (e.g. sigmoid(0)=0.5)
    contribute exactly 0 downstream.  Do not change this padding scheme.
    """
    w_dtype = jnp.bfloat16 if use_bf16 else jnp.float32
    weights, biases, acts = [], [], []
    prev_out_p = layers[0][0].shape[0]   # first layer in-dim stays unpadded
    for li, (w, b, act) in enumerate(layers):
        din, dout = w.shape
        din_p = din if li == 0 else _round_up(din, LANE)
        dout_p = _round_up(dout, LANE)
        assert din_p == prev_out_p, "layer feature-dim chaining broken"
        wp = jnp.zeros((din_p, dout_p), jnp.float32).at[:din, :dout].set(w)
        bp = jnp.zeros((1, dout_p), jnp.float32).at[:, :dout].set(b)
        weights.append(wp.astype(w_dtype))
        biases.append(bp)                 # bias stays f32 (f32 epilogue)
        acts.append(act)
        prev_out_p = dout_p
    return weights, biases, tuple(acts)


def _vmem_limit_bytes(bt, din, dout_p, weights, biases):
    param_bytes = sum(int(w.size) * w.dtype.itemsize for w in weights)
    param_bytes += sum(int(b.size) * b.dtype.itemsize for b in biases)
    max_feat = max([din, dout_p] + [w.shape[1] for w in weights])
    act_bytes = bt * max_feat * 4 * 4                  # a few f32 slabs
    io_bytes = 2 * bt * din * 4 + 2 * bt * dout_p * 4  # double-buffered tiles
    est = 2 * param_bytes + act_bytes + io_bytes
    # generous margin, but stay well under v7x's 64 MiB physical VMEM
    return int(min(64 * 2**20, max(32 * 2**20, 4 * est)))


# ---------------------------------------------------------------------------
# Forward wrapper: one fused pallas_call for the whole network.
# ---------------------------------------------------------------------------
def nn_forward(x, weights, biases, acts, output_size, *,
               batch_tile=512, gridless_max_batch=256):
    B, din = x.shape
    assert din == weights[0].shape[0], "x feature dim must match first layer"
    dout_p = weights[-1].shape[1]
    kernel = functools.partial(fused_mlp_kernel, acts=acts)
    params = [t for wb in zip(weights, biases) for t in wb]

    if B <= gridless_max_batch:
        # Small batch: single full-block call, no grid, no software pipeline.
        # Everything (params + one activation slab) lives in VMEM.
        out_p = pl.pallas_call(
            kernel,
            out_shape=jax.ShapeDtypeStruct((B, dout_p), jnp.float32),
        )(x, *params)
        return out_p[:, :output_size]

    # Large batch: grid over batch tiles; weights resident (constant block
    # index across the grid); batch axis "parallel" for megacore sharding.
    # Ensure >= 2 tiles so both v7x TensorCores get work.
    bt = min(batch_tile, _round_up(pl.cdiv(B, 2), SUBLANE))
    bt = max(bt, SUBLANE)
    grid = (pl.cdiv(B, bt),)   # ragged last block handled by Pallas

    in_specs = [pl.BlockSpec((bt, din), lambda i: (i, 0))]
    for w, b in zip(weights, biases):
        in_specs.append(pl.BlockSpec(w.shape, lambda i: (0, 0)))
        in_specs.append(pl.BlockSpec(b.shape, lambda i: (0, 0)))

    out_p = pl.pallas_call(
        kernel,
        out_shape=jax.ShapeDtypeStruct((B, dout_p), jnp.float32),
        grid=grid,
        in_specs=in_specs,
        out_specs=pl.BlockSpec((bt, dout_p), lambda i: (i, 0)),
        compiler_params=pltpu.CompilerParams(
            dimension_semantics=("parallel",),
            vmem_limit_bytes=_vmem_limit_bytes(bt, din, dout_p, weights, biases),
        ),
    )(x, *params)
    return out_p[:, :output_size]


# ---------------------------------------------------------------------------
# Reference (pure JAX, unpadded, f32-accurate matmuls) for sanity check
# ---------------------------------------------------------------------------
def nn_forward_ref(x, layers):
    for w, b, act in layers:
        y = jnp.dot(x, w, precision=jax.lax.Precision.HIGHEST) + b
        x = _apply_act(y, act)
    return x


if __name__ == "__main__":
    key = jax.random.PRNGKey(0)
    k_small, k_big, k_params = jax.random.split(key, 3)

    # Small shapes consistent with a time-series MLP.
    input_size = 32
    hidden_sizes = [64, 32]
    output_size = 16

    layers = build_nn_params(k_params, input_size, hidden_sizes, output_size)
    use_bf16 = _mxu_prefers_bf16()

    # --- Path 1: small batch -> grid-less fused call, f32 weights -----------
    batch_small = 8
    x_small = jax.random.normal(k_small, (batch_small, input_size), jnp.float32)
    w_f32, b_f32, acts = pad_layers(layers, use_bf16=False)
    out_small = nn_forward(x_small, w_f32, b_f32, acts, output_size)
    out_small = jax.block_until_ready(out_small)
    ref_small = nn_forward_ref(x_small, layers)
    assert out_small.shape == (batch_small, output_size)
    assert jnp.allclose(out_small, ref_small, atol=1e-4, rtol=1e-4)

    # --- Path 2: large batch -> batch-tiled grid (>=2 tiles), bf16 on v6e/v7x
    batch_big = 700   # not a multiple of the tile: exercises the ragged block
    x_big = jax.random.normal(k_big, (batch_big, input_size), jnp.float32)
    w_q, b_q, acts_q = pad_layers(layers, use_bf16=use_bf16)
    out_big = nn_forward(x_big, w_q, b_q, acts_q, output_size, batch_tile=512)
    out_big = jax.block_until_ready(out_big)
    ref_big = nn_forward_ref(x_big, layers)
    tol = 5e-2 if use_bf16 else 1e-4
    assert out_big.shape == (batch_big, output_size)
    assert jnp.allclose(out_big, ref_big, atol=tol, rtol=tol)

    print("KERNEL_OK")
</pallas_src>

<mosaic_0001>
module attributes {stable_mosaic.version = 11 : i64} {
  func.func @fused_mlp_kernel(%arg0: memref<8x32xf32, #tpu.memory_space<vmem>>, %arg1: memref<32x128xf32, #tpu.memory_space<vmem>>, %arg2: memref<1x128xf32, #tpu.memory_space<vmem>>, %arg3: memref<128x128xf32, #tpu.memory_space<vmem>>, %arg4: memref<1x128xf32, #tpu.memory_space<vmem>>, %arg5: memref<128x128xf32, #tpu.memory_space<vmem>>, %arg6: memref<1x128xf32, #tpu.memory_space<vmem>>, %arg7: memref<8x128xf32, #tpu.memory_space<vmem>>) attributes {dimension_semantics = [], scalar_prefetch = 0 : i64, scratch_operands = 0 : i64, tpu.core_type = #tpu.core_type<tc>} {
    %c0 = arith.constant 0 : index
    %c0_0 = arith.constant 0 : index
    %0 = vector.load %arg0[%c0, %c0_0] : memref<8x32xf32, #tpu.memory_space<vmem>>, vector<8x32xf32>
    %c0_1 = arith.constant 0 : index
    %c0_2 = arith.constant 0 : index
    %1 = vector.load %arg1[%c0_1, %c0_2] : memref<32x128xf32, #tpu.memory_space<vmem>>, vector<32x128xf32>
    %c0_3 = arith.constant 0 : index
    %c0_4 = arith.constant 0 : index
    %2 = vector.load %arg2[%c0_3, %c0_4] : memref<1x128xf32, #tpu.memory_space<vmem>>, vector<1x128xf32>
    %cst = arith.constant dense<0.000000e+00> : vector<8x128xf32>
    %3 = tpu.matmul %0, %1, %cst {dimension_numbers = #tpu.dot_dimension_numbers<[1], [0], [0], [1], [0, 0, 1, 1], [], []>} : vector<8x32xf32>, vector<32x128xf32>, vector<8x128xf32> -> vector<8x128xf32>
    %4 = vector.broadcast %2 : vector<1x128xf32> to vector<8x128xf32>
    %5 = arith.addf %3, %4 : vector<8x128xf32>
    %cst_5 = arith.constant 0.000000e+00 : f32
    %6 = vector.broadcast %cst_5 : f32 to vector<8x128xf32>
    %7 = arith.cmpf ogt, %5, %6 : vector<8x128xf32>
    %8 = math.exp %5 : vector<8x128xf32>
    %cst_6 = arith.constant 1.000000e+00 : f32
    %9 = vector.broadcast %cst_6 : f32 to vector<8x128xf32>
    %10 = arith.subf %8, %9 : vector<8x128xf32>
    %11 = arith.select %7, %5, %10 : vector<8x128xi1>, vector<8x128xf32>
    %c0_7 = arith.constant 0 : index
    %c0_8 = arith.constant 0 : index
    %12 = vector.load %arg3[%c0_7, %c0_8] : memref<128x128xf32, #tpu.memory_space<vmem>>, vector<128x128xf32>
    %c0_9 = arith.constant 0 : index
    %c0_10 = arith.constant 0 : index
    %13 = vector.load %arg4[%c0_9, %c0_10] : memref<1x128xf32, #tpu.memory_space<vmem>>, vector<1x128xf32>
    %cst_11 = arith.constant dense<0.000000e+00> : vector<8x128xf32>
    %14 = tpu.matmul %11, %12, %cst_11 {dimension_numbers = #tpu.dot_dimension_numbers<[1], [0], [0], [1], [0, 0, 1, 1], [], []>} : vector<8x128xf32>, vector<128x128xf32>, vector<8x128xf32> -> vector<8x128xf32>
    %15 = vector.broadcast %13 : vector<1x128xf32> to vector<8x128xf32>
    %16 = arith.addf %14, %15 : vector<8x128xf32>
    %cst_12 = arith.constant 0.000000e+00 : f32
    %17 = vector.broadcast %cst_12 : f32 to vector<8x128xf32>
    %18 = arith.cmpf ogt, %16, %17 : vector<8x128xf32>
    %19 = math.exp %16 : vector<8x128xf32>
    %cst_13 = arith.constant 1.000000e+00 : f32
    %20 = vector.broadcast %cst_13 : f32 to vector<8x128xf32>
    %21 = arith.subf %19, %20 : vector<8x128xf32>
    %22 = arith.select %18, %16, %21 : vector<8x128xi1>, vector<8x128xf32>
    %c0_14 = arith.constant 0 : index
    %c0_15 = arith.constant 0 : index
    %23 = vector.load %arg5[%c0_14, %c0_15] : memref<128x128xf32, #tpu.memory_space<vmem>>, vector<128x128xf32>
    %c0_16 = arith.constant 0 : index
    %c0_17 = arith.constant 0 : index
    %24 = vector.load %arg6[%c0_16, %c0_17] : memref<1x128xf32, #tpu.memory_space<vmem>>, vector<1x128xf32>
    %cst_18 = arith.constant dense<0.000000e+00> : vector<8x128xf32>
    %25 = tpu.matmul %22, %23, %cst_18 {dimension_numbers = #tpu.dot_dimension_numbers<[1], [0], [0], [1], [0, 0, 1, 1], [], []>} : vector<8x128xf32>, vector<128x128xf32>, vector<8x128xf32> -> vector<8x128xf32>
    %26 = vector.broadcast %24 : vector<1x128xf32> to vector<8x128xf32>
    %27 = arith.addf %25, %26 : vector<8x128xf32>
    %c0_19 = arith.constant 0 : index
    %c0_20 = arith.constant 0 : index
    %28 = vector.load %arg7[%c0_19, %c0_20] : memref<8x128xf32, #tpu.memory_space<vmem>>, vector<8x128xf32>
    tpu.vector_store %arg7[%c0_19, %c0_20], %27 {strides = array<i32>} : memref<8x128xf32, #tpu.memory_space<vmem>>, vector<8x128xf32>,
    return
  }
}

</mosaic_0001>

<llo_original>
// kernel: tpu_custom_call.1
$region0: #{tpu_custom_call.1}
  #allocation0 [shape = 'u32[]', space=smem, size = 0x4, offset = 0x4, fixed_abs, tag = 'smem constant byte address 0x4 - core index']
  #allocation1 [shape = 'u32[144,128]{1,0:T(1,128)}', space=vmem, size = 0x12000, scoped, tag = 'internal scratch']
  %s0 = inlined_call_operand.hbm [shape: f32[8,32], index: 0, kind: input, shape index: {}]
  %s1 = inlined_call_operand.hbm [shape: f32[32,128], index: 1, kind: input, shape index: {}]
  %s2 = inlined_call_operand.vmem [shape: f32[1,128], index: 2, kind: input, shape index: {}]
  %s3 = inlined_call_operand.hbm [shape: f32[128,128], index: 3, kind: input, shape index: {}]
  %s4 = inlined_call_operand.vmem [shape: f32[1,128], index: 4, kind: input, shape index: {}]
  %s5 = inlined_call_operand.hbm [shape: f32[128,128], index: 5, kind: input, shape index: {}]
  %s6 = inlined_call_operand.vmem [shape: f32[1,128], index: 6, kind: input, shape index: {}]
  %s7 = inlined_call_operand.hbm [shape: f32[8,128], index: 7, kind: output, shape index: {}]
  %s8 = sld [smem:[#allocation0]]
  $region54: #{tpu_custom_call.1} parent=0
    _
  %s10 = ssub.s32 1, %s8
  %s11 = scalar_select 0, %s10, %s8
  $region1: #{tpu_custom_call.1} parent=0
    #allocation2 [shape = 'u8[4096]{0}', space=vmem, size = 0x1000, scoped, tag = 'input window, operand 0, single buffered']
    #allocation3 [shape = 's32[1]{0}', space=sflag, size = 0x4, scoped, tag = 'scoped memory for tpu_custom_call.1']
    #allocation4 [shape = 's32[1]{0}', space=sflag, size = 0x4, scoped, tag = 'scoped memory for tpu_custom_call.1']
    #allocation5 [shape = 'u8[16384]{0}', space=vmem, size = 0x4000, scoped, tag = 'input window, operand 1, single buffered']
    #allocation6 [shape = 's32[1]{0}', space=sflag, size = 0x4, scoped, tag = 'scoped memory for tpu_custom_call.1']
    #allocation7 [shape = 'u8[65536]{0}', space=vmem, size = 0x10000, scoped, tag = 'input window, operand 3, single buffered']
    #allocation8 [shape = 'u8[65536]{0}', space=vmem, size = 0x10000, scoped, tag = 'input window, operand 5, single buffered']
    #allocation9 [shape = 's32[1]{0}', space=sflag, size = 0x4, scoped, tag = 'scoped memory for tpu_custom_call.1']
    #allocation10 [shape = 'u8[4096]{0}', space=vmem, size = 0x1000, scoped, tag = 'output window, operand 0, single buffered']
    %12 = vsyncpa [#allocation3], 0
    %13 = vsyncpa [#allocation6], 0
    %14 = vsyncpa [#allocation9], 0
    %15 = vsyncpa [#allocation4], 0
    // Predicated region
    $region2: #{tpu_custom_call.1} parent=1 // pred_check
      _
    $region3: #{tpu_custom_call.1} parent=1 // pred_check_branch
      %17 = sbr.rel (0) target = $region5
    $region4: #{tpu_custom_call.1} parent=1 // pred_region
      %s19 = ssub.s32 128, 128
      %20 = vsyncadd [#allocation3], %s19
      %s22 = sshll.u32 [#allocation2], 4
      %s23 = int_to_ptr.vmem [resolvable:$true] %s22
      %25 = dma.hbm_to_vmem [thread:$0]  %s0, 128, %s23, [#allocation3]
    $region5: #{tpu_custom_call.1} parent=1 // pred_fallthru
      _
    // Predicated region
    $region6: #{tpu_custom_call.1} parent=1 // pred_check
      _
    $region7: #{tpu_custom_call.1} parent=1 // pred_check_branch
      %27 = sbr.rel (0) target = $region9
    $region8: #{tpu_custom_call.1} parent=1 // pred_region
      %s29 = ssub.s32 512, 512
      %30 = vsyncadd [#allocation6], %s29
      %s31 = sshll.u32 [#allocation5], 4
      %s32 = int_to_ptr.vmem [resolvable:$true] %s31
      %37 = dma.hbm_to_vmem [thread:$0]  %s1, 512, %s32, [#allocation6], 128, 128, 8
    $region9: #{tpu_custom_call.1} parent=1 // pred_fallthru
      _
    // Predicated region
    $region10: #{tpu_custom_call.1} parent=1 // pred_check
      _
    $region11: #{tpu_custom_call.1} parent=1 // pred_check_branch
      %39 = sbr.rel (0) target = $region13
    $region12: #{tpu_custom_call.1} parent=1 // pred_region
      _
    $region13: #{tpu_custom_call.1} parent=1 // pred_fallthru
      _
    // Predicated region
    $region14: #{tpu_custom_call.1} parent=1 // pred_check
      _
    $region15: #{tpu_custom_call.1} parent=1 // pred_check_branch
      %41 = sbr.rel (0) target = $region17
    $region16: #{tpu_custom_call.1} parent=1 // pred_region
      %s43 = ssub.s32 2048, 2048
      %44 = vsyncadd [#allocation6], %s43
      %s45 = sshll.u32 [#allocation7], 4
      %s46 = int_to_ptr.vmem [resolvable:$true] %s45
      %51 = dma.hbm_to_vmem [thread:$0]  %s3, 2048, %s46, [#allocation6], 128, 128, 8
    $region17: #{tpu_custom_call.1} parent=1 // pred_fallthru
      _
    // Predicated region
    $region18: #{tpu_custom_call.1} parent=1 // pred_check
      _
    $region19: #{tpu_custom_call.1} parent=1 // pred_check_branch
      %53 = sbr.rel (0) target = $region21
    $region20: #{tpu_custom_call.1} parent=1 // pred_region
      _
    $region21: #{tpu_custom_call.1} parent=1 // pred_fallthru
      _
    // Predicated region
    $region22: #{tpu_custom_call.1} parent=1 // pred_check
      _
    $region23: #{tpu_custom_call.1} parent=1 // pred_check_branch
      %55 = sbr.rel (0) target = $region25
    $region24: #{tpu_custom_call.1} parent=1 // pred_region
      %s57 = ssub.s32 2048, 2048
      %58 = vsyncadd [#allocation9], %s57
      %s59 = sshll.u32 [#allocation8], 4
      %s60 = int_to_ptr.vmem [resolvable:$true] %s59
      %65 = dma.hbm_to_vmem [thread:$0]  %s5, 2048, %s60, [#allocation9], 128, 128, 8
    $region25: #{tpu_custom_call.1} parent=1 // pred_fallthru
      _
    // Predicated region
    $region26: #{tpu_custom_call.1} parent=1 // pred_check
      _
    $region27: #{tpu_custom_call.1} parent=1 // pred_check_branch
      %67 = sbr.rel (0) target = $region29
    $region28: #{tpu_custom_call.1} parent=1 // pred_region
      _
    $region29: #{tpu_custom_call.1} parent=1 // pred_fallthru
      _
    // Predicated region
    $region30: #{tpu_custom_call.1} parent=1 // pred_check
      _
    $region31: #{tpu_custom_call.1} parent=1 // pred_check_branch
      %69 = sbr.rel (0) target = $region33
    $region32: #{tpu_custom_call.1} parent=1 // pred_region
      %70 = dma.done [#allocation3], 128
    $region33: #{tpu_custom_call.1} parent=1 // pred_fallthru
      _
    // Predicated region
    $region34: #{tpu_custom_call.1} parent=1 // pred_check
      _
    $region35: #{tpu_custom_call.1} parent=1 // pred_check_branch
      %72 = sbr.rel (0) target = $region37
    $region36: #{tpu_custom_call.1} parent=1 // pred_region
      %73 = dma.done [#allocation6], 512
    $region37: #{tpu_custom_call.1} parent=1 // pred_fallthru
      _
    // Predicated region
    $region38: #{tpu_custom_call.1} parent=1 // pred_check
      _
    $region39: #{tpu_custom_call.1} parent=1 // pred_check_branch
      %75 = sbr.rel (0) target = $region41
    $region40: #{tpu_custom_call.1} parent=1 // pred_region
      %76 = dma.done [#allocation6], 2048
    $region41: #{tpu_custom_call.1} parent=1 // pred_fallthru
      _
    // Predicated region
    $region42: #{tpu_custom_call.1} parent=1 // pred_check
      _
    $region43: #{tpu_custom_call.1} parent=1 // pred_check_branch
      %78 = sbr.rel (0) target = $region45
    $region44: #{tpu_custom_call.1} parent=1 // pred_region
      %79 = dma.done [#allocation9], 2048
    $region45: #{tpu_custom_call.1} parent=1 // pred_fallthru
      _
    %v80 = vld [vmem:[#allocation2] sm:$0xff]
    %v81 = vld [vmem:[#allocation5] sm:$0xff]
    %v82 = vld [vmem:[#allocation5 + $0x8] sm:$0xff]
    %v83 = vld [vmem:[#allocation5 + $0x10] sm:$0xff]
    %v84 = vld [vmem:[#allocation5 + $0x18] sm:$0xff]
    %v85 = vld [vmem:[%s2] sm:$0x1]
    %v87 = vlaneseq
    %v88 = vshrl.u32 %v87, 7
    %v89 = vsub.s32 0, %v88
    %v90 = vrot.slane %v85, %v89
    %vm92 = vcmask 261120
    %v94 = vsel %vm92, %v80, 0
    %96 = vmatprep.subr.mxu0 0.0
    %97 = vmatpush1.msra.mxu0 0.0
    %98 = vmatprep.subr.mxu0 0.0
    %99 = vmatpush1.msra.mxu0 0.0
    %100 = vmatprep.subr.mxu0 0.0
    %101 = vmatpush1.msra.mxu0 0.0
    %102 = vmatprep.subr.mxu0 0.0
    %103 = vmatpush1.msra.mxu0 0.0
    %104 = vmatprep.subr.mxu0 0.0
    %105 = vmatpush1.msra.mxu0 0.0
    %106 = vmatprep.subr.mxu0 0.0
    %107 = vmatpush1.msra.mxu0 0.0
    %108 = vmatprep.subr.mxu0 0.0
    %109 = vmatpush1.msra.mxu0 0.0
    %110 = vmatprep.subr.mxu0 0.0
    %111 = vmatpush1.msra.mxu0 0.0
    %112 = vmatprep.subr.mxu0 0.0
    %113 = vmatpush1.msra.mxu0 0.0
    %114 = vmatprep.subr.mxu0 0.0
    %115 = vmatpush1.msra.mxu0 0.0
    %116 = vmatprep.subr.mxu0 0.0
    %117 = vmatpush1.msra.mxu0 0.0
    %118 = vmatprep.subr.mxu0 0.0
    %119 = vmatpush1.msra.mxu0 0.0
    %120 = vmatprep.subr.mxu0 0.0
    %121 = vmatpush1.msra.mxu0 %v84
    %122 = vmatprep.subr.mxu0 0.0
    %123 = vmatpush1.msra.mxu0 %v83
    %124 = vmatprep.subr.mxu0 0.0
    %125 = vmatpush1.msra.mxu0 %v82
    %126 = vmatprep.subr.mxu0 0.0
    %127 = vmatpush1.msra.mxu0 %v81
    %128 = vmatprep.subr.mxu0 0.0
    %129 = vmatpush2.msra.mxu0 0.0
    %130 = vmatprep.subr.mxu0 0.0
    %131 = vmatpush2.msra.mxu0 0.0
    %132 = vmatprep.subr.mxu0 0.0
    %133 = vmatpush2.msra.mxu0 0.0
    %134 = vmatprep.subr.mxu0 0.0
    %135 = vmatpush2.msra.mxu0 0.0
    %136 = vmatprep.subr.mxu0 0.0
    %137 = vmatpush2.msra.mxu0 0.0
    %138 = vmatprep.subr.mxu0 0.0
    %139 = vmatpush2.msra.mxu0 0.0
    %140 = vmatprep.subr.mxu0 0.0
    %141 = vmatpush2.msra.mxu0 0.0
    %142 = vmatprep.subr.mxu0 0.0
    %143 = vmatpush2.msra.mxu0 0.0
    %144 = vmatprep.subr.mxu0 0.0
    %145 = vmatpush2.msra.mxu0 0.0
    %146 = vmatprep.subr.mxu0 0.0
    %147 = vmatpush2.msra.mxu0 0.0
    %148 = vmatprep.subr.mxu0 0.0
    %149 = vmatpush2.msra.mxu0 0.0
    %150 = vmatprep.subr.mxu0 0.0
    %151 = vmatpush2.msra.mxu0 0.0
    %152 = vmatprep.subr.mxu0 0.0
    %153 = vmatpush2.msra.mxu0 0.0
    %154 = vmatprep.subr.mxu0 0.0
    %155 = vmatpush2.msra.mxu0 0.0
    %156 = vmatprep.subr.mxu0 0.0
    %157 = vmatpush2.msra.mxu0 0.0
    %158 = vmatprep.subr.mxu0 0.0
    %159 = vmatpush2.msra.mxu0 0.0
    %160 = vmatprep.mubr.f32.mxu0 0.0
    %161 = vmatmul.mubr.f32.gmra.mxu0 %v94
    %v162 = vpop.f32.mrf.mxu0
    %v163 = vadd.f32 %v90, %v162
    %v164 = vpop.f32.mrf.mxu0
    %165 = vdwg.mxu0
    %vm166 = vcmp.gt.f32.partialorder %v163, 0.0
    %v167 = vmul.f32 %v163, 1.442695
    %v168 = vpow.pop %v167
    %v169 = vsub.f32 %v168, 1.0
    %v170 = vsel %vm166, %v163, %v169
    %v171 = vld [vmem:[#allocation7] sm:$0xff]
    %v172 = vld [vmem:[#allocation7 + $0x8] sm:$0xff]
    %v173 = vld [vmem:[#allocation7 + $0x10] sm:$0xff]
    %v174 = vld [vmem:[#allocation7 + $0x18] sm:$0xff]
    %v175 = vld [vmem:[#allocation7 + $0x20] sm:$0xff]
    %v176 = vld [vmem:[#allocation7 + $0x28] sm:$0xff]
    %v177 = vld [vmem:[#allocation7 + $0x30] sm:$0xff]
    %v178 = vld [vmem:[#allocation7 + $0x38] sm:$0xff]
    %v179 = vld [vmem:[#allocation7 + $0x40] sm:$0xff]
    %v180 = vld [vmem:[#allocation7 + $0x48] sm:$0xff]
    %v181 = vld [vmem:[#allocation7 + $0x50] sm:$0xff]
    %v182 = vld [vmem:[#allocation7 + $0x58] sm:$0xff]
    %v183 = vld [vmem:[#allocation7 + $0x60] sm:$0xff]
    %v184 = vld [vmem:[#allocation7 + $0x68] sm:$0xff]
    %v185 = vld [vmem:[#allocation7 + $0x70] sm:$0xff]
    %v186 = vld [vmem:[#allocation7 + $0x78] sm:$0xff]
    %v187 = vld [vmem:[%s4] sm:$0x1]
    %v189 = vlaneseq
    %v190 = vshrl.u32 %v189, 7
    %v191 = vsub.s32 0, %v190
    %v192 = vrot.slane %v187, %v191
    %194 = vmatprep.subr.mxu0 0.0
    %195 = vmatpush1.msra.mxu0 %v186
    %196 = vmatprep.subr.mxu0 0.0
    %197 = vmatpush1.msra.mxu0 %v185
    %198 = vmatprep.subr.mxu0 0.0
    %199 = vmatpush1.msra.mxu0 %v184
    %200 = vmatprep.subr.mxu0 0.0
    %201 = vmatpush1.msra.mxu0 %v183
    %202 = vmatprep.subr.mxu0 0.0
    %203 = vmatpush1.msra.mxu0 %v182
    %204 = vmatprep.subr.mxu0 0.0
    %205 = vmatpush1.msra.mxu0 %v181
    %206 = vmatprep.subr.mxu0 0.0
    %207 = vmatpush1.msra.mxu0 %v180
    %208 = vmatprep.subr.mxu0 0.0
    %209 = vmatpush1.msra.mxu0 %v179
    %210 = vmatprep.subr.mxu0 0.0
    %211 = vmatpush1.msra.mxu0 %v178
    %212 = vmatprep.subr.mxu0 0.0
    %213 = vmatpush1.msra.mxu0 %v177
    %214 = vmatprep.subr.mxu0 0.0
    %215 = vmatpush1.msra.mxu0 %v176
    %216 = vmatprep.subr.mxu0 0.0
    %217 = vmatpush1.msra.mxu0 %v175
    %218 = vmatprep.subr.mxu0 0.0
    %219 = vmatpush1.msra.mxu0 %v174
    %220 = vmatprep.subr.mxu0 0.0
    %221 = vmatpush1.msra.mxu0 %v173
    %222 = vmatprep.subr.mxu0 0.0
    %223 = vmatpush1.msra.mxu0 %v172
    %224 = vmatprep.subr.mxu0 0.0
    %225 = vmatpush1.msra.mxu0 %v171
    %226 = vmatprep.subr.mxu0 0.0
    %227 = vmatpush2.msra.mxu0 0.0
    %228 = vmatprep.subr.mxu0 0.0
    %229 = vmatpush2.msra.mxu0 0.0
    %230 = vmatprep.subr.mxu0 0.0
    %231 = vmatpush2.msra.mxu0 0.0
    %232 = vmatprep.subr.mxu0 0.0
    %233 = vmatpush2.msra.mxu0 0.0
    %234 = vmatprep.subr.mxu0 0.0
    %235 = vmatpush2.msra.mxu0 0.0
    %236 = vmatprep.subr.mxu0 0.0
    %237 = vmatpush2.msra.mxu0 0.0
    %238 = vmatprep.subr.mxu0 0.0
    %239 = vmatpush2.msra.mxu0 0.0
    %240 = vmatprep.subr.mxu0 0.0
    %241 = vmatpush2.msra.mxu0 0.0
    %242 = vmatprep.subr.mxu0 0.0
    %243 = vmatpush2.msra.mxu0 0.0
    %244 = vmatprep.subr.mxu0 0.0
    %245 = vmatpush2.msra.mxu0 0.0
    %246 = vmatprep.subr.mxu0 0.0
    %247 = vmatpush2.msra.mxu0 0.0
    %248 = vmatprep.subr.mxu0 0.0
    %249 = vmatpush2.msra.mxu0 0.0
    %250 = vmatprep.subr.mxu0 0.0
    %251 = vmatpush2.msra.mxu0 0.0
    %252 = vmatprep.subr.mxu0 0.0
    %253 = vmatpush2.msra.mxu0 0.0
    %254 = vmatprep.subr.mxu0 0.0
    %255 = vmatpush2.msra.mxu0 0.0
    %256 = vmatprep.subr.mxu0 0.0
    %257 = vmatpush2.msra.mxu0 0.0
    %258 = vmatprep.mubr.f32.mxu0 0.0
    %259 = vmatmul.mubr.f32.gmra.mxu0 %v170
    %v260 = vpop.f32.mrf.mxu0
    %v261 = vadd.f32 %v192, %v260
    %v262 = vpop.f32.mrf.mxu0
    %263 = vdwg.mxu0
    %vm264 = vcmp.gt.f32.partialorder %v261, 0.0
    %v265 = vmul.f32 %v261, 1.442695
    %v266 = vpow.pop %v265
    %v267 = vsub.f32 %v266, 1.0
    %v268 = vsel %vm264, %v261, %v267
    %v269 = vld [vmem:[#allocation8] sm:$0xff]
    %v270 = vld [vmem:[#allocation8 + $0x8] sm:$0xff]
    %v271 = vld [vmem:[#allocation8 + $0x10] sm:$0xff]
    %v272 = vld [vmem:[#allocation8 + $0x18] sm:$0xff]
    %v273 = vld [vmem:[#allocation8 + $0x20] sm:$0xff]
    %v274 = vld [vmem:[#allocation8 + $0x28] sm:$0xff]
    %v275 = vld [vmem:[#allocation8 + $0x30] sm:$0xff]
    %v276 = vld [vmem:[#allocation8 + $0x38] sm:$0xff]
    %v277 = vld [vmem:[#allocation8 + $0x40] sm:$0xff]
    %v278 = vld [vmem:[#allocation8 + $0x48] sm:$0xff]
    %v279 = vld [vmem:[#allocation8 + $0x50] sm:$0xff]
    %v280 = vld [vmem:[#allocation8 + $0x58] sm:$0xff]
    %v281 = vld [vmem:[#allocation8 + $0x60] sm:$0xff]
    %v282 = vld [vmem:[#allocation8 + $0x68] sm:$0xff]
    %v283 = vld [vmem:[#allocation8 + $0x70] sm:$0xff]
    %v284 = vld [vmem:[#allocation8 + $0x78] sm:$0xff]
    %v285 = vld [vmem:[%s6] sm:$0x1]
    %v287 = vlaneseq
    %v288 = vshrl.u32 %v287, 7
    %v289 = vsub.s32 0, %v288
    %v290 = vrot.slane %v285, %v289
    %292 = vmatprep.subr.mxu0 0.0
    %293 = vmatpush1.msra.mxu0 %v284
    %294 = vmatprep.subr.mxu0 0.0
    %295 = vmatpush1.msra.mxu0 %v283
    %296 = vmatprep.subr.mxu0 0.0
    %297 = vmatpush1.msra.mxu0 %v282
    %298 = vmatprep.subr.mxu0 0.0
    %299 = vmatpush1.msra.mxu0 %v281
    %300 = vmatprep.subr.mxu0 0.0
    %301 = vmatpush1.msra.mxu0 %v280
    %302 = vmatprep.subr.mxu0 0.0
    %303 = vmatpush1.msra.mxu0 %v279
    %304 = vmatprep.subr.mxu0 0.0
    %305 = vmatpush1.msra.mxu0 %v278
    %306 = vmatprep.subr.mxu0 0.0
    %307 = vmatpush1.msra.mxu0 %v277
    %308 = vmatprep.subr.mxu0 0.0
    %309 = vmatpush1.msra.mxu0 %v276
    %310 = vmatprep.subr.mxu0 0.0
    %311 = vmatpush1.msra.mxu0 %v275
    %312 = vmatprep.subr.mxu0 0.0
    %313 = vmatpush1.msra.mxu0 %v274
    %314 = vmatprep.subr.mxu0 0.0
    %315 = vmatpush1.msra.mxu0 %v273
    %316 = vmatprep.subr.mxu0 0.0
    %317 = vmatpush1.msra.mxu0 %v272
    %318 = vmatprep.subr.mxu0 0.0
    %319 = vmatpush1.msra.mxu0 %v271
    %320 = vmatprep.subr.mxu0 0.0
    %321 = vmatpush1.msra.mxu0 %v270
    %322 = vmatprep.subr.mxu0 0.0
    %323 = vmatpush1.msra.mxu0 %v269
    %324 = vmatprep.subr.mxu0 0.0
    %325 = vmatpush2.msra.mxu0 0.0
    %326 = vmatprep.subr.mxu0 0.0
    %327 = vmatpush2.msra.mxu0 0.0
    %328 = vmatprep.subr.mxu0 0.0
    %329 = vmatpush2.msra.mxu0 0.0
    %330 = vmatprep.subr.mxu0 0.0
    %331 = vmatpush2.msra.mxu0 0.0
    %332 = vmatprep.subr.mxu0 0.0
    %333 = vmatpush2.msra.mxu0 0.0
    %334 = vmatprep.subr.mxu0 0.0
    %335 = vmatpush2.msra.mxu0 0.0
    %336 = vmatprep.subr.mxu0 0.0
    %337 = vmatpush2.msra.mxu0 0.0
    %338 = vmatprep.subr.mxu0 0.0
    %339 = vmatpush2.msra.mxu0 0.0
    %340 = vmatprep.subr.mxu0 0.0
    %341 = vmatpush2.msra.mxu0 0.0
    %342 = vmatprep.subr.mxu0 0.0
    %343 = vmatpush2.msra.mxu0 0.0
    %344 = vmatprep.subr.mxu0 0.0
    %345 = vmatpush2.msra.mxu0 0.0
    %346 = vmatprep.subr.mxu0 0.0
    %347 = vmatpush2.msra.mxu0 0.0
    %348 = vmatprep.subr.mxu0 0.0
    %349 = vmatpush2.msra.mxu0 0.0
    %350 = vmatprep.subr.mxu0 0.0
    %351 = vmatpush2.msra.mxu0 0.0
    %352 = vmatprep.subr.mxu0 0.0
    %353 = vmatpush2.msra.mxu0 0.0
    %354 = vmatprep.subr.mxu0 0.0
    %355 = vmatpush2.msra.mxu0 0.0
    %356 = vmatprep.mubr.f32.mxu0 0.0
    %357 = vmatmul.mubr.f32.gmra.mxu0 %v268
    %v358 = vpop.f32.mrf.mxu0
    %v359 = vadd.f32 %v290, %v358
    %v360 = vpop.f32.mrf.mxu0
    %361 = vdwg.mxu0
    %362 = vst [vmem:[#allocation10] sm:$0xff] %v359
    // Predicated region
    $region46: #{tpu_custom_call.1} parent=1 // pred_check
      _
    $region47: #{tpu_custom_call.1} parent=1 // pred_check_branch
      %364 = sbr.rel (0) target = $region49
    $region48: #{tpu_custom_call.1} parent=1 // pred_region
      %s366 = ssub.s32 128, 128
      %367 = vsyncadd [#allocation4], %s366
      %s369 = sshll.u32 [#allocation10], 4
      %s370 = int_to_ptr.vmem [resolvable:$true] %s369
      %372 = dma.vmem_to_hbm [thread:$0]  %s370, 128, %s7, [#allocation4]
    $region49: #{tpu_custom_call.1} parent=1 // pred_fallthru
      _
    // Predicated region
    $region50: #{tpu_custom_call.1} parent=1 // pred_check
      _
    $region51: #{tpu_custom_call.1} parent=1 // pred_check_branch
      %374 = sbr.rel (0) target = $region53
    $region52: #{tpu_custom_call.1} parent=1 // pred_region
      %375 = dma.done [#allocation4], 128
    $region53: #{tpu_custom_call.1} parent=1 // pred_fallthru
      _
    %376 = vsyncpa [#allocation3], 1
    %377 = vsyncpa [#allocation6], 1
    %378 = vsyncpa [#allocation9], 1
    %379 = vsyncpa [#allocation4], 1

</llo_original>
